<compile_context>
chip_gen: v7x
topology: tpu7x:2x2x1
jax: 0.10.0
libtpu: 0.0.40
codegen_flags: <defaults>
</compile_context>

<pallas_src>
import functools
import math

import jax
import jax.numpy as jnp
from jax.experimental import pallas as pl
from jax.experimental.pallas import tpu as pltpu


def _round_up(x, m):
    return ((x + m - 1) // m) * m


def _attentive_agg_kernel(adj_ref, x_ref, f1_ref, f2_ref, o_ref, *,
                          alpha, ones_col):
    k = pl.program_id(1)

    @pl.when(k == 0)
    def _init():
        o_ref[...] = jnp.zeros_like(o_ref)

    # Attention weights for this (row-tile, neighbor-tile) block.
    score = f1_ref[...] + f2_ref[...]                     # (tm,1)+(1,tk)->(tm,tk)
    score = jnp.where(score > 0, score, alpha * score)    # LeakyReLU(alpha)
    # adj is exactly 0/1 (int8): mask by multiply, no compare+select.
    e = jnp.exp(score) * adj_ref[...].astype(jnp.float32)

    # e @ [inputs | ones]: the "ones" column accumulates the attention rowsum
    # on the MXU alongside the weighted feature aggregation.  bf16 operands,
    # f32 accumulation directly into the K-resident output block.
    o_ref[...] += jnp.dot(e.astype(jnp.bfloat16), x_ref[...],
                          preferred_element_type=jnp.float32)

    @pl.when(k == pl.num_programs(1) - 1)
    def _finalize():
        acc = o_ref[...]
        # One per-row inverse (tm divides) then a broadcast multiply, instead
        # of dividing the whole (tm, fp) tile.
        inv = 1.0 / (acc[:, ones_col:ones_col + 1] + 1e-10)   # matches torch eps
        o_ref[...] = acc * inv


def attentive_aggregator(inputs, adj_mask, W, a, *, alpha=0.2, tm=1024, tk=2048):
    """inputs: (N, F), adj_mask: dense (N, N) 0/1, W: (F,), a: (1, 2F)."""
    N, F = inputs.shape
    assert W.shape == (F,), "module requires feature dim == out_features for inputs*W"
    assert a.shape == (1, 2 * F)
    assert adj_mask.shape == (N, N)

    inputs_f32 = inputs.astype(jnp.float32)

    # Tiny O(N*F) precompute kept outside the kernel.
    h = inputs_f32 * W.astype(jnp.float32)[None, :]
    f1 = (h @ a[0, :F].astype(jnp.float32)).reshape(N, 1)    # source-node logit
    f2t = (h @ a[0, F:].astype(jnp.float32)).reshape(1, N)   # neighbor-node logit

    # Tile sizes: rows in multiples of 32 (int8-adj sublane granularity),
    # neighbor columns in multiples of 128 (lane width).
    ROW = 32
    nr_min = _round_up(N, ROW)
    tm = _round_up(max(ROW, min(tm, nr_min)), ROW)
    # Ensure >= 2 row tiles when possible so the "parallel" row axis can shard
    # across both TensorCores on v7x (megacore); harmless on 1-TC chips.
    if nr_min // tm < 2 and nr_min >= 2 * ROW:
        tm = _round_up(max(ROW, nr_min // 2), ROW)
    tk = max(128, min(tk, _round_up(N, 128)))

    nr = _round_up(N, tm)            # padded row count
    nc = _round_up(N, tk)            # padded neighbor count
    fp = _round_up(F + 1, 128)       # lane-dense feature dim (+1 "ones" column)

    # int8 adjacency (4x smaller HBM stream / VMEM buffers than f32).
    adj_p = jnp.zeros((nr, nc), jnp.int8).at[:N, :N].set(
        (adj_mask != 0).astype(jnp.int8))
    # bf16 neighbor features; 1.0 is exact in bf16 so the rowsum column stays valid.
    x_p = jnp.zeros((nc, fp), jnp.bfloat16).at[:N, :F].set(
        inputs_f32.astype(jnp.bfloat16))
    x_p = x_p.at[:, F].set(1.0)
    f1_p = jnp.zeros((nr, 1), jnp.float32).at[:N, :].set(f1)
    f2_p = jnp.zeros((1, nc), jnp.float32).at[:, :N].set(f2t)

    # VMEM budget: generous on 128 MiB parts (v5e/v6e), <= ~48 MiB on v7x (64 MiB).
    try:
        phys_vmem = pltpu.get_tpu_info().vmem_capacity_bytes
    except Exception:
        phys_vmem = 64 * 1024 * 1024
    vmem_limit = int(min(96 * 1024 * 1024, phys_vmem * 3 // 4))

    kernel = functools.partial(_attentive_agg_kernel, alpha=alpha, ones_col=F)
    out_p = pl.pallas_call(
        kernel,
        out_shape=jax.ShapeDtypeStruct((nr, fp), jnp.float32),
        grid_spec=pltpu.PrefetchScalarGridSpec(
            num_scalar_prefetch=0,
            grid=(nr // tm, nc // tk),
            in_specs=[
                pl.BlockSpec((tm, tk), lambda i, k: (i, k)),   # adj block (int8)
                pl.BlockSpec((tk, fp), lambda i, k: (k, 0)),   # neighbor feats (bf16)
                pl.BlockSpec((tm, 1), lambda i, k: (i, 0)),    # f1 (row logits)
                pl.BlockSpec((1, tk), lambda i, k: (0, k)),    # f2 (col logits)
            ],
            out_specs=pl.BlockSpec((tm, fp), lambda i, k: (i, 0)),
        ),
        compiler_params=pltpu.CompilerParams(
            dimension_semantics=("parallel", "arbitrary"),
            vmem_limit_bytes=vmem_limit,
        ),
    )(adj_p, x_p, f1_p, f2_p)

    # TODO(synk): scalar-prefetched per-(i,k) tile-nonempty bitmap to skip
    # all-zero adj tiles (saves EUP exp + MXU FLOPs) on genuinely sparse graphs.
    return out_p[:N, :F]


def reference(inputs, adj_mask, W, a, alpha=0.2):
    N, F = inputs.shape
    h = inputs * W[None, :]
    f1 = h @ a[0, :F]
    f2 = h @ a[0, F:]
    score = f1[:, None] + f2[None, :]
    score = jnp.where(score > 0, score, alpha * score)
    e = jnp.where(adj_mask > 0, jnp.exp(score), 0.0)
    rowsum = e.sum(axis=1, keepdims=True) + 1e-10
    return (e @ inputs) / rowsum


if __name__ == "__main__":
    N, F = 64, 32

    key = jax.random.PRNGKey(0)
    k_x, k_adj, k_a = jax.random.split(key, 3)

    # node features
    inputs = jax.random.normal(k_x, (N, F), dtype=jnp.float32)

    # random binary adjacency with self loops (dense stand-in for sparse COO adj)
    adj = (jax.random.uniform(k_adj, (N, N)) < 0.2).astype(jnp.float32)
    adj = jnp.minimum(adj + jnp.eye(N, dtype=jnp.float32), 1.0)

    # parameters, matching the module's initialization
    W = jnp.ones((F,), dtype=jnp.float32)            # nn.init.ones_(self.W)
    stdv = 1.0 / math.sqrt(2 * F)                    # in_features == out_features
    a = jax.random.uniform(k_a, (1, 2 * F), minval=-stdv, maxval=stdv,
                           dtype=jnp.float32)

    out = attentive_aggregator(inputs, adj, W, a, alpha=0.2)
    out = jax.block_until_ready(out)

    ref = reference(inputs, adj, W, a, alpha=0.2)
    assert out.shape == (N, F)
    assert not bool(jnp.isnan(out).any()), "NaN in output"
    # bf16 MXU operands with f32 accumulation -> ~1e-2 level agreement.
    assert jnp.allclose(out, ref, atol=2e-2, rtol=2e-2), "mismatch vs reference"

    print("KERNEL_OK")
</pallas_src>

<mosaic_0001>
module attributes {stable_mosaic.version = 11 : i64} {
  func.func @_attentive_agg_kernel(%arg0: i32, %arg1: i32, %arg2: memref<32x128xi8, #tpu.memory_space<vmem>>, %arg3: memref<128x128xbf16, #tpu.memory_space<vmem>>, %arg4: memref<32x1xf32, #tpu.memory_space<vmem>>, %arg5: memref<1x128xf32, #tpu.memory_space<vmem>>, %arg6: memref<32x128xf32, #tpu.memory_space<vmem>>) attributes {dimension_semantics = [#tpu.dimension_semantics<parallel>, #tpu.dimension_semantics<arbitrary>], iteration_bounds = array<i64: 2, 1>, scalar_prefetch = 0 : i64, scratch_operands = 0 : i64, tpu.core_type = #tpu.core_type<tc>, window_params = [{transform_indices = @transform_0, window_bounds = array<i64: 32, 128>}, {transform_indices = @transform_1, window_bounds = array<i64: 128, 128>}, {transform_indices = @transform_2, window_bounds = array<i64: 32, 1>}, {transform_indices = @transform_3, window_bounds = array<i64: 1, 128>}, {transform_indices = @transform_4, window_bounds = array<i64: 32, 128>}]} {
    %c0_i32 = arith.constant 0 : i32
    %0 = arith.cmpi eq, %arg1, %c0_i32 : i32
    %1 = arith.extui %0 : i1 to i32
    %c0_i32_0 = arith.constant 0 : i32
    %2 = arith.cmpi ne, %1, %c0_i32_0 : i32
    scf.if %2 {
      %cst_16 = arith.constant 0.000000e+00 : f32
      %26 = vector.broadcast %cst_16 : f32 to vector<32x128xf32>
      %c0_17 = arith.constant 0 : index
      %c0_18 = arith.constant 0 : index
      %27 = vector.load %arg6[%c0_17, %c0_18] : memref<32x128xf32, #tpu.memory_space<vmem>>, vector<32x128xf32>
      tpu.vector_store %arg6[%c0_17, %c0_18], %26 {strides = array<i32>} : memref<32x128xf32, #tpu.memory_space<vmem>>, vector<32x128xf32>,
    } else {
    }
    %c0 = arith.constant 0 : index
    %c0_1 = arith.constant 0 : index
    %3 = vector.load %arg4[%c0, %c0_1] : memref<32x1xf32, #tpu.memory_space<vmem>>, vector<32x1xf32>
    %c0_2 = arith.constant 0 : index
    %c0_3 = arith.constant 0 : index
    %4 = vector.load %arg5[%c0_2, %c0_3] : memref<1x128xf32, #tpu.memory_space<vmem>>, vector<1x128xf32>
    %5 = vector.broadcast %3 : vector<32x1xf32> to vector<32x128xf32>
    %6 = vector.broadcast %4 : vector<1x128xf32> to vector<32x128xf32>
    %7 = arith.addf %5, %6 : vector<32x128xf32>
    %cst = arith.constant 0.000000e+00 : f32
    %8 = vector.broadcast %cst : f32 to vector<32x128xf32>
    %9 = arith.cmpf ogt, %7, %8 : vector<32x128xf32>
    %cst_4 = arith.constant 2.000000e-01 : f32
    %10 = vector.broadcast %cst_4 : f32 to vector<32x128xf32>
    %11 = arith.mulf %10, %7 : vector<32x128xf32>
    %12 = arith.select %9, %7, %11 : vector<32x128xi1>, vector<32x128xf32>
    %13 = math.exp %12 : vector<32x128xf32>
    %c0_5 = arith.constant 0 : index
    %c0_6 = arith.constant 0 : index
    %14 = vector.load %arg2[%c0_5, %c0_6] : memref<32x128xi8, #tpu.memory_space<vmem>>, vector<32x128xi8>
    %15 = arith.sitofp %14 : vector<32x128xi8> to vector<32x128xf32>
    %16 = arith.mulf %13, %15 : vector<32x128xf32>
    %c0_7 = arith.constant 0 : index
    %c0_8 = arith.constant 0 : index
    %17 = vector.load %arg6[%c0_7, %c0_8] : memref<32x128xf32, #tpu.memory_space<vmem>>, vector<32x128xf32>
    %18 = arith.truncf %16 : vector<32x128xf32> to vector<32x128xbf16>
    %c0_9 = arith.constant 0 : index
    %c0_10 = arith.constant 0 : index
    %19 = vector.load %arg3[%c0_9, %c0_10] : memref<128x128xbf16, #tpu.memory_space<vmem>>, vector<128x128xbf16>
    %cst_11 = arith.constant dense<0.000000e+00> : vector<32x128xf32>
    %20 = tpu.matmul %18, %19, %cst_11 {dimension_numbers = #tpu.dot_dimension_numbers<[1], [0], [0], [1], [0, 0, 1, 1], [], []>} : vector<32x128xbf16>, vector<128x128xbf16>, vector<32x128xf32> -> vector<32x128xf32>
    %21 = arith.addf %17, %20 : vector<32x128xf32>
    %c0_12 = arith.constant 0 : index
    %c0_13 = arith.constant 0 : index
    %22 = vector.load %arg6[%c0_12, %c0_13] : memref<32x128xf32, #tpu.memory_space<vmem>>, vector<32x128xf32>
    tpu.vector_store %arg6[%c0_12, %c0_13], %21 {strides = array<i32>} : memref<32x128xf32, #tpu.memory_space<vmem>>, vector<32x128xf32>,
    %c0_i32_14 = arith.constant 0 : i32
    %23 = arith.cmpi eq, %arg1, %c0_i32_14 : i32
    %24 = arith.extui %23 : i1 to i32
    %c0_i32_15 = arith.constant 0 : i32
    %25 = arith.cmpi ne, %24, %c0_i32_15 : i32
    scf.if %25 {
      %c0_16 = arith.constant 0 : index
      %c0_17 = arith.constant 0 : index
      %26 = vector.load %arg6[%c0_16, %c0_17] : memref<32x128xf32, #tpu.memory_space<vmem>>, vector<32x128xf32>
      %27 = vector.extract_strided_slice %26 {offsets = [0, 32], sizes = [32, 1], strides = [1, 1]} : vector<32x128xf32> to vector<32x1xf32>
      %cst_18 = arith.constant 1.000000e-10 : f32
      %28 = vector.broadcast %cst_18 : f32 to vector<32x1xf32>
      %29 = arith.addf %27, %28 : vector<32x1xf32>
      %cst_19 = arith.constant 1.000000e+00 : f32
      %30 = vector.broadcast %cst_19 : f32 to vector<32x1xf32>
      %31 = arith.divf %30, %29 : vector<32x1xf32>
      %32 = vector.broadcast %31 : vector<32x1xf32> to vector<32x128xf32>
      %33 = arith.mulf %26, %32 : vector<32x128xf32>
      %c0_20 = arith.constant 0 : index
      %c0_21 = arith.constant 0 : index
      %34 = vector.load %arg6[%c0_20, %c0_21] : memref<32x128xf32, #tpu.memory_space<vmem>>, vector<32x128xf32>
      tpu.vector_store %arg6[%c0_20, %c0_21], %33 {strides = array<i32>} : memref<32x128xf32, #tpu.memory_space<vmem>>, vector<32x128xf32>,
    } else {
    }
    return
  }
  func.func @transform_0(%arg0: i32, %arg1: i32) -> (i32, i32) {
    %c0_i32 = arith.constant 0 : i32
    return %arg0, %arg1 : i32, i32
  }
  func.func @transform_1(%arg0: i32, %arg1: i32) -> (i32, i32) {
    %c0_i32 = arith.constant 0 : i32
    %c0_i32_0 = arith.constant 0 : i32
    return %arg1, %c0_i32 : i32, i32
  }
  func.func @transform_2(%arg0: i32, %arg1: i32) -> (i32, i32) {
    %c0_i32 = arith.constant 0 : i32
    %c0_i32_0 = arith.constant 0 : i32
    return %arg0, %c0_i32 : i32, i32
  }
  func.func @transform_3(%arg0: i32, %arg1: i32) -> (i32, i32) {
    %c0_i32 = arith.constant 0 : i32
    %c0_i32_0 = arith.constant 0 : i32
    return %c0_i32, %arg1 : i32, i32
  }
  func.func @transform_4(%arg0: i32, %arg1: i32) -> (i32, i32) {
    %c0_i32 = arith.constant 0 : i32
    %c0_i32_0 = arith.constant 0 : i32
    return %arg0, %c0_i32 : i32, i32
  }
}

</mosaic_0001>

<llo_original>
// kernel: tpu_custom_call.1
$region0: #{tpu_custom_call.1}
  #allocation0 [shape = 'u32[]', space=smem, size = 0x4, offset = 0x4, fixed_abs, tag = 'smem constant byte address 0x4 - core index']
  #allocation1 [shape = 'u32[144,128]{1,0:T(1,128)}', space=vmem, size = 0x12000, scoped, tag = 'internal scratch']
  %s0 = inlined_call_operand.hbm [shape: s8[64,128], index: 0, kind: input, shape index: {}]
  %s1 = inlined_call_operand.vmem [shape: bf16[128,128], index: 1, kind: input, shape index: {}]
  %s2 = inlined_call_operand.vmem [shape: f32[64,1], index: 2, kind: input, shape index: {}]
  %s3 = inlined_call_operand.vmem [shape: f32[1,128], index: 3, kind: input, shape index: {}]
  %s4 = inlined_call_operand.hbm [shape: f32[64,128], index: 4, kind: output, shape index: {}]
  %s5 = sld [smem:[#allocation0]]
  $region61: #{tpu_custom_call.1} parent=0
    _
  %s7 = ssub.s32 1, %s5
  %s8 = scalar_select 0, %s7, %s5
  $region1: #{tpu_custom_call.1} parent=0
    #allocation2 [shape = 'u8[8192]{0}', space=vmem, size = 0x2000, scoped, tag = 'input window, operand 0']
    #allocation3 [shape = 's32[2]{0}', space=sflag, size = 0x8, scoped, tag = 'scoped memory for tpu_custom_call.1']
    #allocation4 [shape = 's32[2]{0}', space=sflag, size = 0x8, scoped, tag = 'scoped memory for tpu_custom_call.1']
    #allocation5 [shape = 'u8[32768]{0}', space=vmem, size = 0x8000, scoped, tag = 'output window, operand 0']
    %9 = vsyncpa [#allocation3], 0
    %s10 = scalar_lea.sflag [#allocation3], 1
    %11 = vsyncpa %s10, 0
    %12 = vsyncpa [#allocation4], 0
    %s13 = scalar_lea.sflag [#allocation4], 1
    %14 = vsyncpa %s13, 0
    loop: start=0, step=1, limit=4
    $region2: #{tpu_custom_call.1} parent=1 // loop_pre_header
      _
    $region3: #{tpu_custom_call.1} parent=1 // loop_header
      %s16 = sphi 0, %s20
      %p17 = scmp.ge.s32.totalorder %s16, 4
      %s23 = sphi 0, %s35
      %s24 = sphi 0, %s31
      %s25 = sphi 0, %s23
      %s26 = sphi 0, %s24
      %s27 = sphi 0, %s25
      %s28 = sphi 0, %s26
      %s40 = sphi 0, %s42
      %s43 = sphi 0, %s40
      %s44 = sphi 0, %s43
      %s60 = sphi 0, %s44
      %s66 = sphi 0, %s68
      %s69 = sphi 0, %s66
      %s70 = sphi 0, %s69
      %s86 = sphi 0, %s70
      %s92 = sphi 0, %s94
      %s95 = sphi 0, %s92
      %s96 = sphi 0, %s95
      %s112 = sphi 0, %s96
      %s118 = sphi 0, %s120
      %s121 = sphi 0, %s118
      %s122 = sphi 0, %s121
      %s138 = sphi 0, %s122
      %s144 = sphi 0, %s146
      %s147 = sphi 0, %s144
      %s148 = sphi 0, %s147
      %s164 = sphi 0, %s148
    $region4: #{tpu_custom_call.1} parent=1 // loop_header_branch
      %19 = sbr.rel (%p17) target = $region8
    $region5: #{tpu_custom_call.1} parent=1 // loop_body
      %s21 = ssub.s32 %s16, 1
      %s22 = ssub.s32 %s16, 2
      %s29 = sadd.s32 1, %s24
      %p30 = scmp.ge.s32.totalorder %s29, 1
      %s31 = scalar_select %p30, 0, %s29
      %s32 = sadd.s32 1, %s23
      %s33 = scalar_select %p30, %s32, %s23
      %p34 = scmp.ge.s32.totalorder %s33, 2
      %s35 = scalar_select %p34, 0, %s33
      %s36 = ssub.s32 %s23, %s35
      %s37 = ssub.s32 %s24, %s31
      %s38 = sor.u32 %s36, %s37
      %p39 = scmp.eq.s32.totalorder %s38, 0
      %s41 = sadd.s32 %s40, 1
      %s42 = scalar_select %p39, %s40, %s41
      %p45 = pneg %p39
      %p46 = scmp.eq.s32.totalorder %s16, 1
      %p47 = por %p45, %p46
      %p48 = scmp.ne.s32.totalorder %s40, %s43
      %p49 = scmp.eq.s32.totalorder %s16, 0
      %p50 = por %p48, %p49
      %p51 = scmp.ne.s32.totalorder %s40, %s43
      %p52 = scmp.eq.s32.totalorder %s21, 1
      %p53 = por %p51, %p52
      %p54 = scmp.ne.s32.totalorder %s43, %s44
      %p55 = scmp.eq.s32.totalorder %s21, 0
      %p56 = por %p54, %p55
      %p57 = scmp.ne.s32.totalorder %s43, %s44
      %p58 = scmp.eq.s32.totalorder %s22, 1
      %p59 = por %p57, %p58
      %p61 = scmp.ne.s32.totalorder %s44, %s60
      %p62 = scmp.eq.s32.totalorder %s22, 0
      %p63 = por %p61, %p62
      %s64 = ssub.s32 %s24, %s31
      %p65 = scmp.eq.s32.totalorder %s64, 0
      %s67 = sadd.s32 %s66, 1
      %s68 = scalar_select %p65, %s66, %s67
      %p71 = pneg %p65
      %p72 = scmp.eq.s32.totalorder %s16, 1
      %p73 = por %p71, %p72
      %p74 = scmp.ne.s32.totalorder %s66, %s69
      %p75 = scmp.eq.s32.totalorder %s16, 0
      %p76 = por %p74, %p75
      %p77 = scmp.ne.s32.totalorder %s66, %s69
      %p78 = scmp.eq.s32.totalorder %s21, 1
      %p79 = por %p77, %p78
      %p80 = scmp.ne.s32.totalorder %s69, %s70
      %p81 = scmp.eq.s32.totalorder %s21, 0
      %p82 = por %p80, %p81
      %p83 = scmp.ne.s32.totalorder %s69, %s70
      %p84 = scmp.eq.s32.totalorder %s22, 1
      %p85 = por %p83, %p84
      %p87 = scmp.ne.s32.totalorder %s70, %s86
      %p88 = scmp.eq.s32.totalorder %s22, 0
      %p89 = por %p87, %p88
      %s90 = ssub.s32 %s23, %s35
      %p91 = scmp.eq.s32.totalorder %s90, 0
      %s93 = sadd.s32 %s92, 1
      %s94 = scalar_select %p91, %s92, %s93
      %p97 = pneg %p91
      %p98 = scmp.eq.s32.totalorder %s16, 1
      %p99 = por %p97, %p98
      %p100 = scmp.ne.s32.totalorder %s92, %s95
      %p101 = scmp.eq.s32.totalorder %s16, 0
      %p102 = por %p100, %p101
      %p103 = scmp.ne.s32.totalorder %s92, %s95
      %p104 = scmp.eq.s32.totalorder %s21, 1
      %p105 = por %p103, %p104
      %p106 = scmp.ne.s32.totalorder %s95, %s96
      %p107 = scmp.eq.s32.totalorder %s21, 0
      %p108 = por %p106, %p107
      %p109 = scmp.ne.s32.totalorder %s95, %s96
      %p110 = scmp.eq.s32.totalorder %s22, 1
      %p111 = por %p109, %p110
      %p113 = scmp.ne.s32.totalorder %s96, %s112
      %p114 = scmp.eq.s32.totalorder %s22, 0
      %p115 = por %p113, %p114
      %s116 = ssub.s32 %s24, %s31
      %p117 = scmp.eq.s32.totalorder %s116, 0
      %s119 = sadd.s32 %s118, 1
      %s120 = scalar_select %p117, %s118, %s119
      %p123 = pneg %p117
      %p124 = scmp.eq.s32.totalorder %s16, 1
      %p125 = por %p123, %p124
      %p126 = scmp.ne.s32.totalorder %s118, %s121
      %p127 = scmp.eq.s32.totalorder %s16, 0
      %p128 = por %p126, %p127
      %p129 = scmp.ne.s32.totalorder %s118, %s121
      %p130 = scmp.eq.s32.totalorder %s21, 1
      %p131 = por %p129, %p130
      %p132 = scmp.ne.s32.totalorder %s121, %s122
      %p133 = scmp.eq.s32.totalorder %s21, 0
      %p134 = por %p132, %p133
      %p135 = scmp.ne.s32.totalorder %s121, %s122
      %p136 = scmp.eq.s32.totalorder %s22, 1
      %p137 = por %p135, %p136
      %p139 = scmp.ne.s32.totalorder %s122, %s138
      %p140 = scmp.eq.s32.totalorder %s22, 0
      %p141 = por %p139, %p140
      %s142 = ssub.s32 %s23, %s35
      %p143 = scmp.eq.s32.totalorder %s142, 0
      %s145 = sadd.s32 %s144, 1
      %s146 = scalar_select %p143, %s144, %s145
      %p149 = pneg %p143
      %p150 = scmp.eq.s32.totalorder %s16, 1
      %p151 = por %p149, %p150
      %p152 = scmp.ne.s32.totalorder %s144, %s147
      %p153 = scmp.eq.s32.totalorder %s16, 0
      %p154 = por %p152, %p153
      %p155 = scmp.ne.s32.totalorder %s144, %s147
      %p156 = scmp.eq.s32.totalorder %s21, 1
      %p157 = por %p155, %p156
      %p158 = scmp.ne.s32.totalorder %s147, %s148
      %p159 = scmp.eq.s32.totalorder %s21, 0
      %p160 = por %p158, %p159
      %p161 = scmp.ne.s32.totalorder %s147, %s148
      %p162 = scmp.eq.s32.totalorder %s22, 1
      %p163 = por %p161, %p162
      %p165 = scmp.ne.s32.totalorder %s148, %s164
      %p166 = scmp.eq.s32.totalorder %s22, 0
      %p167 = por %p165, %p166
      %p168 = scmp.le.s32.totalorder 1, %s16
      %p169 = scmp.lt.s32.totalorder %s16, 3
      %p170 = pnand %p168, %p169
      %p171 = pneg %p170
      // Predicated region
      $region9: #{tpu_custom_call.1} parent=5 // pred_check
        _
      $region10: #{tpu_custom_call.1} parent=5 // pred_check_branch
        %173 = sbr.rel (%p170) target = $region12
      $region11: #{tpu_custom_call.1} parent=5 // pred_region
        %s174 = ssub.s32 %s16, 1
        // Predicated region
        $region13: #{tpu_custom_call.1} parent=11 // pred_check
          %p175 = pneg %p82
        $region14: #{tpu_custom_call.1} parent=11 // pred_check_branch
          %177 = sbr.rel (%p175) target = $region16
        $region15: #{tpu_custom_call.1} parent=11 // pred_region
          %s178 = smul.u32 16, %s26
          %p179 = scmp.lt.s32.totalorder %s178, 15
          %s180 = scalar_select %p179, %s178, 15
          %s181 = smul.addr %s180, 4
          %s182 = scalar_lea.vmem %s1, %s181
          %s183 = smul.u32 16, %s26
        $region16: #{tpu_custom_call.1} parent=11 // pred_fallthru
          _
        // Predicated region
        $region17: #{tpu_custom_call.1} parent=11 // pred_check
          %p184 = pneg %p134
        $region18: #{tpu_custom_call.1} parent=11 // pred_check_branch
          %186 = sbr.rel (%p184) target = $region20
        $region19: #{tpu_custom_call.1} parent=11 // pred_region
          %p187 = scmp.lt.s32.totalorder %s26, 0
          %s188 = scalar_select %p187, %s26, 0
          %s189 = scalar_lea.vmem %s3, %s188
        $region20: #{tpu_custom_call.1} parent=11 // pred_fallthru
          _
      $region12: #{tpu_custom_call.1} parent=5 // pred_fallthru
        _
      %p190 = scmp.lt.s32.totalorder %s16, 2
      // Predicated region
      $region21: #{tpu_custom_call.1} parent=5 // pred_check
        %p191 = pneg %p190
      $region22: #{tpu_custom_call.1} parent=5 // pred_check_branch
        %193 = sbr.rel (%p191) target = $region24
      $region23: #{tpu_custom_call.1} parent=5 // pred_region
        // Predicated region
        $region25: #{tpu_custom_call.1} parent=23 // pred_check
          %p194 = pneg %p50
        $region26: #{tpu_custom_call.1} parent=23 // pred_check_branch
          %196 = sbr.rel (%p194) target = $region28
        $region27: #{tpu_custom_call.1} parent=23 // pred_region
          %s197 = sand.u32 %s40, 1
          %s198 = scalar_lea.sflag [#allocation3], %s197
          %s199 = sand.u32 %s40, 1
          %s200 = smul.addr %s199, 8
          %s201 = scalar_lea.vmem [#allocation2], %s200
          %s203 = ssub.s32 128, 128
          %204 = vsyncadd %s198, %s203
          %s205 = sadd.s32 %s24, %s23
          %s206 = smul.addr %s205, 128
          %s207 = scalar_lea.hbm %s0, %s206
          %s209 = sshll.u32 %s201, 4
          %s210 = int_to_ptr.vmem [resolvable:$true] %s209
          %212 = dma.hbm_to_vmem [thread:$0]  %s207, 128, %s210, %s198
        $region28: #{tpu_custom_call.1} parent=23 // pred_fallthru
          _
        // Predicated region
        $region29: #{tpu_custom_call.1} parent=23 // pred_check
          %p213 = pneg %p102
        $region30: #{tpu_custom_call.1} parent=23 // pred_check_branch
          %215 = sbr.rel (%p213) target = $region32
        $region31: #{tpu_custom_call.1} parent=23 // pred_region
          %s216 = smul.u32 4, %s23
          %p217 = scmp.lt.s32.totalorder %s216, 7
          %s218 = scalar_select %p217, %s216, 7
          %s219 = smul.addr %s218, 8
          %s220 = scalar_lea.vmem %s2, %s219
          %s221 = smul.u32 4, %s23
        $region32: #{tpu_custom_call.1} parent=23 // pred_fallthru
          _
      $region24: #{tpu_custom_call.1} parent=5 // pred_fallthru
        _
      %p222 = scmp.le.s32.totalorder 1, %s16
      %p223 = scmp.lt.s32.totalorder %s16, 3
      %p224 = pnand %p222, %p223
      %p225 = pneg %p224
      // Predicated region
      $region33: #{tpu_custom_call.1} parent=5 // pred_check
        _
      $region34: #{tpu_custom_call.1} parent=5 // pred_check_branch
        %227 = sbr.rel (%p224) target = $region36
      $region35: #{tpu_custom_call.1} parent=5 // pred_region
        %s228 = ssub.s32 %s16, 1
        %s229 = sand.u32 %s43, 1
        %s230 = scalar_lea.sflag [#allocation3], %s229
        %s231 = sand.u32 %s43, 1
        %s232 = smul.addr %s231, 8
        %s233 = scalar_lea.vmem [#allocation2], %s232
        // Predicated region
        $region37: #{tpu_custom_call.1} parent=35 // pred_check
          %p234 = pneg %p56
        $region38: #{tpu_custom_call.1} parent=35 // pred_check_branch
          %236 = sbr.rel (%p234) target = $region40
        $region39: #{tpu_custom_call.1} parent=35 // pred_region
          %237 = dma.done %s230, 128
        $region40: #{tpu_custom_call.1} parent=35 // pred_fallthru
          _
        %s238 = sand.u32 %s43, 1
        %s239 = scalar_lea.sflag [#allocation3], %s238
        %s240 = sand.u32 %s43, 1
        %s241 = smul.addr %s240, 8
        %s242 = scalar_lea.vmem [#allocation2], %s241
        %p243 = pneg %p56
        %p244 = pneg %p53
        %s245 = smul.u32 16, %s26
        %p246 = scmp.lt.s32.totalorder %s245, 15
        %s247 = scalar_select %p246, %s245, 15
        %s248 = smul.addr %s247, 4
        %s249 = scalar_lea.vmem %s1, %s248
        %p250 = pneg %p82
        %p251 = pneg %p79
        %s252 = smul.u32 4, %s25
        %p253 = scmp.lt.s32.totalorder %s252, 7
        %s254 = scalar_select %p253, %s252, 7
        %s255 = smul.addr %s254, 8
        %s256 = scalar_lea.vmem %s2, %s255
        %p257 = pneg %p108
        %p258 = pneg %p105
        %p259 = scmp.lt.s32.totalorder %s26, 0
        %s260 = scalar_select %p259, %s26, 0
        %s261 = scalar_lea.vmem %s3, %s260
        %p262 = pneg %p134
        %p263 = pneg %p131
        %p264 = pneg %p160
        %p265 = pneg %p157
        %s266 = sand.u32 %s147, 1
        %s267 = scalar_lea.sflag [#allocation4], %s266
        %s268 = sand.u32 %s147, 1
        %s269 = smul.addr %s268, 32
        %s270 = scalar_lea.vmem [#allocation5], %s269
        %s271 = smul.u32 16, %s26
        %p272 = scmp.lt.s32.totalorder %s271, 15
        %s273 = scalar_select %p272, %s271, 15
        %s274 = smul.addr %s273, 4
        %s275 = scalar_lea.vmem %s1, %s274
        %s276 = smul.u32 16, %s26
        %s277 = smul.u32 4, %s25
        %p278 = scmp.lt.s32.totalorder %s277, 7
        %s279 = scalar_select %p278, %s277, 7
        %s280 = smul.addr %s279, 8
        %s281 = scalar_lea.vmem %s2, %s280
        %s282 = smul.u32 4, %s25
        %p283 = scmp.lt.s32.totalorder %s26, 0
        %s284 = scalar_select %p283, %s26, 0
        %s285 = scalar_lea.vmem %s3, %s284
        %s286 = smul.u32 4, %s25
        %p288 = scmp.eq.s32.totalorder %s26, 0
        // Predicated region
        $region41: #{tpu_custom_call.1} parent=35 // pred_check
          %p289 = pneg %p288
        $region42: #{tpu_custom_call.1} parent=35 // pred_check_branch
          %291 = sbr.rel (%p289) target = $region44
        $region43: #{tpu_custom_call.1} parent=35 // pred_region
          %292 = vst [vmem:[%s270] sm:$0xff] 0.0
          %293 = vst [vmem:[%s270 + $0x8] sm:$0xff] 0.0
          %294 = vst [vmem:[%s270 + $0x10] sm:$0xff] 0.0
          %295 = vst [vmem:[%s270 + $0x18] sm:$0xff] 0.0
        $region44: #{tpu_custom_call.1} parent=35 // pred_fallthru
          _
        %v296 = vld [vmem:[%s281] sm:$0xff]
        %v297 = vld [vmem:[%s281 + $0x8] sm:$0xff]
        %v298 = vld [vmem:[%s281 + $0x10] sm:$0xff]
        %v299 = vld [vmem:[%s281 + $0x18] sm:$0xff]
        %v300 = vld [vmem:[%s285] sm:$0x1]
        %302 = vset.pattern.permute.xlu0 0
        %303 = vperm.xlu0 %302, %v296
        %v304 = vpop.permute.xlu0 %303
        %307 = vset.pattern.permute.xlu0 0
        %308 = vperm.xlu0 %307, %v297
        %v309 = vpop.permute.xlu0 %308
        %312 = vset.pattern.permute.xlu0 0
        %313 = vperm.xlu0 %312, %v298
        %v314 = vpop.permute.xlu0 %313
        %317 = vset.pattern.permute.xlu0 0
        %318 = vperm.xlu0 %317, %v299
        %v319 = vpop.permute.xlu0 %318
        %v322 = vlaneseq
        %v323 = vshrl.u32 %v322, 7
        %v324 = vsub.s32 0, %v323
        %v325 = vrot.slane %v300, %v324
        %v327 = vadd.f32 %v304, %v325
        %v328 = vadd.f32 %v309, %v325
        %v329 = vadd.f32 %v314, %v325
        %v330 = vadd.f32 %v319, %v325
        %vm331 = vcmp.gt.f32.partialorder %v327, 0.0
        %vm332 = vcmp.gt.f32.partialorder %v328, 0.0
        %vm333 = vcmp.gt.f32.partialorder %v329, 0.0
        %vm334 = vcmp.gt.f32.partialorder %v330, 0.0
        %v335 = vmul.f32 %v327, 0.2
        %v336 = vmul.f32 %v328, 0.2
        %v337 = vmul.f32 %v329, 0.2
        %v338 = vmul.f32 %v330, 0.2
        %v339 = vsel %vm331, %v327, %v335
        %v340 = vsel %vm332, %v328, %v336
        %v341 = vsel %vm333, %v329, %v337
        %v342 = vsel %vm334, %v330, %v338
        %v343 = vmul.f32 %v339, 1.442695
        %v344 = vpow.pop %v343
        %v345 = vmul.f32 %v340, 1.442695
        %v346 = vpow.pop %v345
        %v347 = vmul.f32 %v341, 1.442695
        %v348 = vpow.pop %v347
        %v349 = vmul.f32 %v342, 1.442695
        %v350 = vpow.pop %v349
        %v351 = vld [vmem:[%s233] sm:$0xff]
        %v352 = vunpack.c.0.s8 %v351
        %v353 = vunpack.c.1.s8 %v351
        %v354 = vunpack.c.2.s8 %v351
        %v355 = vunpack.c.3.s8 %v351
        %v356 = vcvt.s32.f32 %v352
        %v357 = vcvt.s32.f32 %v353
        %v358 = vcvt.s32.f32 %v354
        %v359 = vcvt.s32.f32 %v355
        %v360 = vmul.f32 %v344, %v356
        %v361 = vmul.f32 %v346, %v357
        %v362 = vmul.f32 %v348, %v358
        %v363 = vmul.f32 %v350, %v359
        %v364 = vld [vmem:[%s270] sm:$0xff]
        %v365 = vld [vmem:[%s270 + $0x8] sm:$0xff]
        %v366 = vld [vmem:[%s270 + $0x10] sm:$0xff]
        %v367 = vld [vmem:[%s270 + $0x18] sm:$0xff]
        %v368 = vpack.c.bf16 %v361, %v360
        %v369 = vpack.c.bf16 %v363, %v362
        %v370 = vld [vmem:[%s275] sm:$0xf]
        %v371 = vld [vmem:[%s275 + $0x4] sm:$0xf]
        %v372 = vld [vmem:[%s275 + $0x8] sm:$0xf]
        %v373 = vld [vmem:[%s275 + $0xc] sm:$0xf]
        %v374 = vld [vmem:[%s275 + $0x10] sm:$0xf]
        %v375 = vld [vmem:[%s275 + $0x14] sm:$0xf]
        %v376 = vld [vmem:[%s275 + $0x18] sm:$0xf]
        %v377 = vld [vmem:[%s275 + $0x1c] sm:$0xf]
        %v378 = vld [vmem:[%s275 + $0x20] sm:$0xf]
        %v379 = vld [vmem:[%s275 + $0x24] sm:$0xf]
        %v380 = vld [vmem:[%s275 + $0x28] sm:$0xf]
        %v381 = vld [vmem:[%s275 + $0x2c] sm:$0xf]
        %v382 = vld [vmem:[%s275 + $0x30] sm:$0xf]
        %v383 = vld [vmem:[%s275 + $0x34] sm:$0xf]
        %v384 = vld [vmem:[%s275 + $0x38] sm:$0xf]
        %v385 = vld [vmem:[%s275 + $0x3c] sm:$0xf]
        %v402 = vunpack.c.l.b16 %v370
        %v403 = vunpack.c.l.b16 %v371
        %v404 = vunpack.c.l.b16 %v372
        %v405 = vunpack.c.l.b16 %v373
        %v406 = vunpack.c.l.b16 %v374
        %v407 = vunpack.c.l.b16 %v375
        %v408 = vunpack.c.l.b16 %v376
        %v409 = vunpack.c.l.b16 %v377
        %v410 = vunpack.c.l.b16 %v378
        %v411 = vunpack.c.l.b16 %v379
        %v412 = vunpack.c.l.b16 %v380
        %v413 = vunpack.c.l.b16 %v381
        %v414 = vunpack.c.l.b16 %v382
        %v415 = vunpack.c.l.b16 %v383
        %v416 = vunpack.c.l.b16 %v384
        %v417 = vunpack.c.l.b16 %v385
        %v418 = vpack.c.b16 %v403, %v402
        %v419 = vpack.c.b16 %v405, %v404
        %v420 = vpack.c.b16 %v407, %v406
        %v421 = vpack.c.b16 %v409, %v408
        %v422 = vpack.c.b16 %v411, %v410
        %v423 = vpack.c.b16 %v413, %v412
        %v424 = vpack.c.b16 %v415, %v414
        %v425 = vpack.c.b16 %v417, %v416
        %434 = vmatprep.subr.bf16.mxu0 0
        %435 = vmatpush1.bf16.msra.mxu0 %v418
        %436 = vmatprep.subr.bf16.mxu0 0
        %437 = vmatpush1.bf16.msra.mxu0 %v419
        %438 = vmatprep.subr.bf16.mxu0 0
        %439 = vmatpush1.bf16.msra.mxu0 %v420
        %440 = vmatprep.subr.bf16.mxu0 0
        %441 = vmatpush1.bf16.msra.mxu0 %v421
        %442 = vmatprep.subr.bf16.mxu0 0
        %443 = vmatpush1.bf16.msra.mxu0 %v422
        %444 = vmatprep.subr.bf16.mxu0 0
        %445 = vmatpush1.bf16.msra.mxu0 %v423
        %446 = vmatprep.subr.bf16.mxu0 0
        %447 = vmatpush1.bf16.msra.mxu0 %v424
        %448 = vmatprep.subr.bf16.mxu0 0
        %449 = vmatpush1.bf16.msra.mxu0 %v425
        %450 = vmatprep.subr.bf16.mxu0 0
        %451 = vmatpush1.bf16.msra.mxu0 0
        %452 = vmatprep.subr.bf16.mxu0 0
        %453 = vmatpush1.bf16.msra.mxu0 0
        %454 = vmatprep.subr.bf16.mxu0 0
        %455 = vmatpush1.bf16.msra.mxu0 0
        %456 = vmatprep.subr.bf16.mxu0 0
        %457 = vmatpush1.bf16.msra.mxu0 0
        %458 = vmatprep.subr.bf16.mxu0 0
        %459 = vmatpush1.bf16.msra.mxu0 0
        %460 = vmatprep.subr.bf16.mxu0 0
        %461 = vmatpush1.bf16.msra.mxu0 0
        %462 = vmatprep.subr.bf16.mxu0 0
        %463 = vmatpush1.bf16.msra.mxu0 0
        %464 = vmatprep.subr.bf16.mxu0 0
        %465 = vmatpush1.bf16.msra.mxu0 0
        %466 = vmatprep.mubr.bf16.mxu0 0
        %467 = vmatmul.mubr.bf16.gmra.mrb[0].mxu0 %v368
        %v468 = vpop.f32.mrb[0].mxu0
        %v469 = vadd.f32 0.0, %v468
        %v470 = vpop.f32.mrb[0].mxu0
        %v471 = vpop.f32.mrb[0].mxu0
        %v472 = vadd.f32 0.0, %v471
        %v473 = vpop.f32.mrb[0].mxu0
        %474 = vmatprep.mubr.bf16.mxu0 0
        %475 = vmatmul.mubr.bf16.gmra.mrb[0].mxu0 %v369
        %v476 = vpop.f32.mrb[0].mxu0
        %v477 = vadd.f32 0.0, %v476
        %v478 = vpop.f32.mrb[0].mxu0
        %v479 = vpop.f32.mrb[0].mxu0
        %v480 = vadd.f32 0.0, %v479
        %v481 = vpop.f32.mrb[0].mxu0
        %482 = vdwg.mxu0
        %v483 = vadd.f32 %v364, %v469
        %v484 = vadd.f32 %v365, %v472
        %v485 = vadd.f32 %v366, %v477
        %v486 = vadd.f32 %v367, %v480
        %487 = vst [vmem:[%s270] sm:$0xff] %v483
        %488 = vst [vmem:[%s270 + $0x8] sm:$0xff] %v484
        %489 = vst [vmem:[%s270 + $0x10] sm:$0xff] %v485
        %490 = vst [vmem:[%s270 + $0x18] sm:$0xff] %v486
        // Predicated region
        $region45: #{tpu_custom_call.1} parent=35 // pred_check
          %p491 = pneg %p288
        $region46: #{tpu_custom_call.1} parent=35 // pred_check_branch
          %493 = sbr.rel (%p491) target = $region48
        $region47: #{tpu_custom_call.1} parent=35 // pred_region
          %v494 = vld [vmem:[%s270] sm:$0xff]
          %v495 = vld [vmem:[%s270 + $0x8] sm:$0xff]
          %v496 = vld [vmem:[%s270 + $0x10] sm:$0xff]
          %v497 = vld [vmem:[%s270 + $0x18] sm:$0xff]
          %v498 = vadd.f32 %v494, 1e-10
          %v499 = vadd.f32 %v495, 1e-10
          %v500 = vadd.f32 %v496, 1e-10
          %v501 = vadd.f32 %v497, 1e-10
          %v502 = vrcp.pop %v498
          %v503 = vmul.f32 1.0, %v502
          %v504 = vrcp.pop %v499
          %v505 = vmul.f32 1.0, %v504
          %v506 = vrcp.pop %v500
          %v507 = vmul.f32 1.0, %v506
          %v508 = vrcp.pop %v501
          %v509 = vmul.f32 1.0, %v508
          %511 = vset.pattern.permute.xlu0 32
          %512 = vperm.xlu0 %511, %v503
          %v513 = vpop.permute.xlu0 %512
          %516 = vset.pattern.permute.xlu0 32
          %517 = vperm.xlu0 %516, %v505
          %v518 = vpop.permute.xlu0 %517
          %521 = vset.pattern.permute.xlu0 32
          %522 = vperm.xlu0 %521, %v507
          %v523 = vpop.permute.xlu0 %522
          %526 = vset.pattern.permute.xlu0 32
          %527 = vperm.xlu0 %526, %v509
          %v528 = vpop.permute.xlu0 %527
          %v530 = vmul.f32 %v494, %v513
          %v531 = vmul.f32 %v495, %v518
          %v532 = vmul.f32 %v496, %v523
          %v533 = vmul.f32 %v497, %v528
          %534 = vst [vmem:[%s270] sm:$0xff] %v530
          %535 = vst [vmem:[%s270 + $0x8] sm:$0xff] %v531
          %536 = vst [vmem:[%s270 + $0x10] sm:$0xff] %v532
          %537 = vst [vmem:[%s270 + $0x18] sm:$0xff] %v533
        $region48: #{tpu_custom_call.1} parent=35 // pred_fallthru
          _
        %s538 = sand.u32 %s147, 1
        %s539 = scalar_lea.sflag [#allocation4], %s538
        %s540 = sand.u32 %s147, 1
        %s541 = smul.addr %s540, 32
        %s542 = scalar_lea.vmem [#allocation5], %s541
        // Predicated region
        $region49: #{tpu_custom_call.1} parent=35 // pred_check
          %p543 = pneg %p157
        $region50: #{tpu_custom_call.1} parent=35 // pred_check_branch
          %545 = sbr.rel (%p543) target = $region52
        $region51: #{tpu_custom_call.1} parent=35 // pred_region
          %s546 = smul.u32 4, %s25
          %s548 = ssub.s32 512, 512
          %549 = vsyncadd %s539, %s548
          %s550 = smul.addr %s546, 128
          %s551 = scalar_lea.hbm %s4, %s550
          %s552 = sshll.u32 %s542, 4
          %s553 = int_to_ptr.vmem [resolvable:$true] %s552
          %558 = dma.vmem_to_hbm [thread:$0]  %s553, 512, %s551, %s539, 128, 128, 8
        $region52: #{tpu_custom_call.1} parent=35 // pred_fallthru
          _
      $region36: #{tpu_custom_call.1} parent=5 // pred_fallthru
        _
      %p559 = scmp.le.s32.totalorder 2, %s16
      // Predicated region
      $region53: #{tpu_custom_call.1} parent=5 // pred_check
        %p560 = pneg %p559
      $region54: #{tpu_custom_call.1} parent=5 // pred_check_branch
        %562 = sbr.rel (%p560) target = $region56
      $region55: #{tpu_custom_call.1} parent=5 // pred_region
        %s563 = ssub.s32 %s16, 2
        // Predicated region
        $region57: #{tpu_custom_call.1} parent=55 // pred_check
          %p564 = pneg %p163
        $region58: #{tpu_custom_call.1} parent=55 // pred_check_branch
          %566 = sbr.rel (%p564) target = $region60
        $region59: #{tpu_custom_call.1} parent=55 // pred_region
          %s567 = sand.u32 %s148, 1
          %s568 = scalar_lea.sflag [#allocation4], %s567
          %s569 = sand.u32 %s148, 1
          %s570 = smul.addr %s569, 32
          %s571 = scalar_lea.vmem [#allocation5], %s570
          %572 = dma.done %s568, 512
        $region60: #{tpu_custom_call.1} parent=55 // pred_fallthru
          _
      $region56: #{tpu_custom_call.1} parent=5 // pred_fallthru
        _
    $region6: #{tpu_custom_call.1} parent=1 // loop_footer
      %s20 = sadd.s32 1, %s16
    $region7: #{tpu_custom_call.1} parent=1 // loop_footer_branch
      %15 = sbr.rel target = $region3
    $region8: #{tpu_custom_call.1} parent=1 // loop_exit
      _
    %573 = vsyncpa [#allocation3], 1
    %s574 = scalar_lea.sflag [#allocation3], 1
    %575 = vsyncpa %s574, 1
    %576 = vsyncpa [#allocation4], 1
    %s577 = scalar_lea.sflag [#allocation4], 1
    %578 = vsyncpa %s577, 1

</llo_original>
